<compile_context>
chip_gen: v5e
topology: v5e:2x2
jax: 0.10.0
libtpu: 0.0.40
codegen_flags: <defaults>
</compile_context>

<pallas_src>
import functools

import jax
import jax.numpy as jnp
from jax.experimental import pallas as pl
from jax.experimental.pallas import tpu as pltpu


def _round_up(x, m):
    return (x + m - 1) // m * m


# ------------------------- fused linear projections ------------------------

def _fused_proj_kernel(x_ref, w_ref, b_ref, o_ref):
    # x_ref: (1, Mp, K) bf16, w_ref: (1, K, N) bf16, b_ref: (1, 1, N) bf16
    # o = x @ w + b, accumulated in f32 on the MXU, stored as bf16.
    acc = jnp.dot(x_ref[0], w_ref[0], preferred_element_type=jnp.float32)
    o_ref[0] = (acc + b_ref[0].astype(jnp.float32)).astype(o_ref.dtype)


def pallas_fused_projections(x_stack, w_stack, b_stack):
    """x_stack: (P, Mp, K), w_stack: (W, K, N), b_stack: (W, 1, N) -> (P, Mp, N).

    Projection p uses weight min(p, W-1): index 0 is the `proj` layer, all
    later projections reuse the single deep-copied compound layer (so the
    shared weight block is fetched from HBM only once across the grid).
    """
    P, Mp, K = x_stack.shape
    W, _, N = w_stack.shape
    itemsize = jnp.dtype(x_stack.dtype).itemsize

    cost = pl.CostEstimate(
        flops=2 * P * Mp * K * N,
        transcendentals=0,
        bytes_accessed=(x_stack.size + w_stack.size + b_stack.size
                        + P * Mp * N) * itemsize,
    )

    return pl.pallas_call(
        _fused_proj_kernel,
        out_shape=jax.ShapeDtypeStruct((P, Mp, N), x_stack.dtype),
        grid=(P,),
        in_specs=[
            pl.BlockSpec((1, Mp, K), lambda p: (p, 0, 0)),
            pl.BlockSpec((1, K, N), lambda p: (jnp.minimum(p, W - 1), 0, 0)),
            pl.BlockSpec((1, 1, N), lambda p: (jnp.minimum(p, W - 1), 0, 0)),
        ],
        out_specs=pl.BlockSpec((1, Mp, N), lambda p: (p, 0, 0)),
        compiler_params=pltpu.CompilerParams(
            dimension_semantics=("parallel",)),
        cost_estimate=cost,
    )(x_stack, w_stack, b_stack)


# ------------------------- prompt assembly (concat) ------------------------

def _build_prompts_kernel(prefix_ref, ctx_ref, classes_ref, suffix_ref, o_ref):
    # prefix_ref : (B, 1, D)
    # ctx_ref    : (n_ctx, D)      shared across classes (broadcast of self.ctx)
    # classes_ref: (B, min_len, D)
    # suffix_ref : (B, S, D)
    # o_ref      : (B, 1 + n_ctx + min_len + S, D)
    b = prefix_ref.shape[0]
    ctx_b = jnp.broadcast_to(ctx_ref[...][None], (b,) + ctx_ref.shape)
    # Assemble the full tile in registers -> one unmasked, lane-dense store.
    o_ref[...] = jnp.concatenate(
        [prefix_ref[...], ctx_b, classes_ref[...], suffix_ref[...]], axis=1)


def _pick_block_cls(n_cls, per_class_bytes, budget_bytes=16 << 20):
    """Largest divisor of n_cls whose double-buffered tile fits the budget."""
    best = 1
    for b in range(1, n_cls + 1):
        if n_cls % b == 0 and b * per_class_bytes * 2 <= budget_bytes:
            best = b
    return best


def pallas_build_prompts(prefix, ctx, classes, suffix):
    """construct_prompts_v2: cat([prefix, ctx_expanded, classes, suffix], dim=1)."""
    n_cls, _, d = prefix.shape
    n_ctx = ctx.shape[0]
    min_len = classes.shape[1]
    s_suf = suffix.shape[1]
    total = 1 + n_ctx + min_len + s_suf
    itemsize = jnp.dtype(prefix.dtype).itemsize

    # per-class VMEM footprint: inputs (prefix+classes+suffix) + full output row
    per_class_bytes = (1 + min_len + s_suf + total) * d * itemsize
    block_cls = _pick_block_cls(n_cls, per_class_bytes)

    cost = pl.CostEstimate(
        flops=0,
        transcendentals=0,
        bytes_accessed=(prefix.size + ctx.size + classes.size + suffix.size
                        + n_cls * total * d) * itemsize,
    )

    return pl.pallas_call(
        _build_prompts_kernel,
        out_shape=jax.ShapeDtypeStruct((n_cls, total, d), prefix.dtype),
        grid=(n_cls // block_cls,),
        in_specs=[
            pl.BlockSpec((block_cls, 1, d), lambda i: (i, 0, 0)),
            pl.BlockSpec((n_ctx, d), lambda i: (0, 0)),        # ctx shared/broadcast
            pl.BlockSpec((block_cls, min_len, d), lambda i: (i, 0, 0)),
            pl.BlockSpec((block_cls, s_suf, d), lambda i: (i, 0, 0)),
        ],
        out_specs=pl.BlockSpec((block_cls, total, d), lambda i: (i, 0, 0)),
        compiler_params=pltpu.CompilerParams(
            dimension_semantics=("parallel",)),   # classes independent -> 2 TCs on v7x
        cost_estimate=cost,
    )(prefix, ctx, classes, suffix)


# ------------------------- Module (parameter setup = glue) -----------------

class MultiModalPromptLearnerPallas:
    def __init__(self, key, *, n_cls, n_ctx, ctx_dim, vis_dim, seq_len,
                 prompt_depth, min_len=1, dtype=jnp.bfloat16):
        assert prompt_depth >= 1
        self.n_cls, self.n_ctx, self.min_len = n_cls, n_ctx, min_len
        self.depth = prompt_depth
        self.dtype = dtype
        n_extra = prompt_depth - 1
        suf_len = seq_len - 1 - min_len - n_ctx
        assert suf_len > 0

        ks = jax.random.split(key, 8)
        # ctx vectors: normal(std=0.02)
        self.ctx = (0.02 * jax.random.normal(ks[0], (n_ctx, ctx_dim))).astype(dtype)
        # proj = nn.Linear(ctx_dim, vis_dim)  (PyTorch default uniform init)
        bound = 1.0 / (ctx_dim ** 0.5)
        self.proj_w_t = jax.random.uniform(
            ks[1], (ctx_dim, vis_dim), minval=-bound, maxval=bound).astype(dtype)
        self.proj_b = jax.random.uniform(
            ks[2], (1, vis_dim), minval=-bound, maxval=bound).astype(dtype)
        # compound_prompts_text: (depth-1) x (n_ctx, ctx_dim), normal(std=0.02)
        self.compound_prompts_text = [
            (0.02 * jax.random.normal(jax.random.fold_in(ks[3], i),
                                      (n_ctx, ctx_dim))).astype(dtype)
            for i in range(n_extra)
        ]
        # compound_prompt_projections: deep copies of ONE layer -> identical init
        self.shared_w_t = jax.random.uniform(
            ks[4], (ctx_dim, vis_dim), minval=-bound, maxval=bound).astype(dtype)
        self.shared_b = jax.random.uniform(
            ks[5], (1, vis_dim), minval=-bound, maxval=bound).astype(dtype)

        # Stacked weights for the fused projection kernel: weight 0 = proj,
        # weight 1 = the single shared compound layer (if any).
        if n_extra > 0:
            self.w_stack = jnp.stack([self.proj_w_t, self.shared_w_t])
            self.b_stack = jnp.stack([self.proj_b, self.shared_b])
        else:
            self.w_stack = self.proj_w_t[None]
            self.b_stack = self.proj_b[None]

        # MXU M dim padded to a full sublane tile.
        self.m_pad = _round_up(max(n_ctx, 8), 8)

        # synthetic CLIP token embeddings (prefix / classes / suffix buffers)
        emb = (0.02 * jax.random.normal(ks[6], (n_cls, seq_len, ctx_dim))).astype(dtype)
        self.token_prefix = emb[:, :1, :]
        self.token_classes = emb[:, 1:1 + min_len, :]
        self.token_suffix = emb[:, 1 + min_len + n_ctx:, :]

    def forward(self):
        # prompts = cat([prefix, ctx(expanded), classes, suffix], dim=1)
        prompts = pallas_build_prompts(
            self.token_prefix, self.ctx, self.token_classes, self.token_suffix)

        # One fused kernel for proj(ctx) + every compound projection.
        pad_rows = self.m_pad - self.n_ctx
        xs = [self.ctx] + list(self.compound_prompts_text)
        x_stack = jnp.stack(
            [jnp.pad(x, ((0, pad_rows), (0, 0))) for x in xs])      # (depth, Mp, K)
        out = pallas_fused_projections(x_stack, self.w_stack, self.b_stack)

        proj_ctx = out[0, :self.n_ctx, :]
        visual_deep_prompts = [out[i, :self.n_ctx, :] for i in range(1, self.depth)]
        return prompts, proj_ctx, self.compound_prompts_text, visual_deep_prompts


# ------------------------- Reference check + demo --------------------------

def _ref_forward(m):
    f32 = jnp.float32
    ctx_e = jnp.broadcast_to(m.ctx[None], (m.n_cls, m.n_ctx, m.ctx.shape[1]))
    prompts = jnp.concatenate(
        [m.token_prefix, ctx_e, m.token_classes, m.token_suffix], axis=1)
    proj_ctx = (m.ctx.astype(f32) @ m.proj_w_t.astype(f32)
                + m.proj_b.astype(f32)).astype(m.dtype)
    vdp = [(c.astype(f32) @ m.shared_w_t.astype(f32)
            + m.shared_b.astype(f32)).astype(m.dtype)
           for c in m.compound_prompts_text]
    return prompts, proj_ctx, vdp


def _close(a, b, atol=1e-2, rtol=1e-2):
    return jnp.allclose(a.astype(jnp.float32), b.astype(jnp.float32),
                        atol=atol, rtol=rtol)


if __name__ == "__main__":
    key = jax.random.PRNGKey(0)
    # Small but faithful shapes: ctx_dim=512 (text width), vis_dim=768 (visual width)
    n_cls, n_ctx, ctx_dim, vis_dim, seq_len, depth = 8, 4, 512, 768, 16, 3
    m = MultiModalPromptLearnerPallas(
        key, n_cls=n_cls, n_ctx=n_ctx, ctx_dim=ctx_dim, vis_dim=vis_dim,
        seq_len=seq_len, prompt_depth=depth, min_len=1)

    prompts, proj_ctx, cpt, vdp = m.forward()
    jax.block_until_ready(prompts)
    jax.block_until_ready(proj_ctx)
    for v in vdp:
        jax.block_until_ready(v)

    # sanity-check against plain-JAX reference (f32 compute, bf16 I/O)
    r_prompts, r_proj, r_vdp = _ref_forward(m)
    assert prompts.shape == (n_cls, seq_len, ctx_dim)
    assert proj_ctx.shape == (n_ctx, vis_dim)
    assert _close(prompts, r_prompts, atol=1e-6, rtol=0.0)   # pure copies: exact
    assert _close(proj_ctx, r_proj)
    assert len(vdp) == depth - 1
    for a, b in zip(vdp, r_vdp):
        assert a.shape == (n_ctx, vis_dim)
        assert _close(a, b)

    print("KERNEL_OK")
</pallas_src>

<mosaic_0001>
module attributes {stable_mosaic.version = 11 : i64} {
  func.func @_build_prompts_kernel(%arg0: i32, %arg1: memref<8x1x512xbf16, #tpu.memory_space<vmem>>, %arg2: memref<4x512xbf16, #tpu.memory_space<vmem>>, %arg3: memref<8x1x512xbf16, #tpu.memory_space<vmem>>, %arg4: memref<8x10x512xbf16, #tpu.memory_space<vmem>>, %arg5: memref<8x16x512xbf16, #tpu.memory_space<vmem>>) attributes {dimension_semantics = [#tpu.dimension_semantics<parallel>], iteration_bounds = array<i64: 1>, scalar_prefetch = 0 : i64, scratch_operands = 0 : i64, tpu.core_type = #tpu.core_type<tc>, window_params = [{transform_indices = @transform_0, window_bounds = array<i64: 8, 1, 512>}, {pipeline_mode = #tpu.pipeline_mode<synchronous>, transform_indices = @transform_1, window_bounds = array<i64: 4, 512>}, {transform_indices = @transform_2, window_bounds = array<i64: 8, 1, 512>}, {transform_indices = @transform_3, window_bounds = array<i64: 8, 10, 512>}, {transform_indices = @transform_4, window_bounds = array<i64: 8, 16, 512>}]} {
    %c0 = arith.constant 0 : index
    %c0_0 = arith.constant 0 : index
    %0 = vector.load %arg2[%c0, %c0_0] : memref<4x512xbf16, #tpu.memory_space<vmem>>, vector<4x512xbf16>
    %1 = vector.shape_cast %0 : vector<4x512xbf16> to vector<1x4x512xbf16>
    %2 = vector.shape_cast %1 : vector<1x4x512xbf16> to vector<1x4x512xbf16>
    %3 = vector.broadcast %2 : vector<1x4x512xbf16> to vector<8x4x512xbf16>
    %c0_1 = arith.constant 0 : index
    %c0_2 = arith.constant 0 : index
    %c0_3 = arith.constant 0 : index
    %4 = vector.load %arg1[%c0_1, %c0_2, %c0_3] : memref<8x1x512xbf16, #tpu.memory_space<vmem>>, vector<8x1x512xbf16>
    %c0_4 = arith.constant 0 : index
    %c0_5 = arith.constant 0 : index
    %c0_6 = arith.constant 0 : index
    %5 = vector.load %arg3[%c0_4, %c0_5, %c0_6] : memref<8x1x512xbf16, #tpu.memory_space<vmem>>, vector<8x1x512xbf16>
    %c0_7 = arith.constant 0 : index
    %c0_8 = arith.constant 0 : index
    %c0_9 = arith.constant 0 : index
    %6 = vector.load %arg4[%c0_7, %c0_8, %c0_9] : memref<8x10x512xbf16, #tpu.memory_space<vmem>>, vector<8x10x512xbf16>
    %7 = tpu.concatenate %4, %3, %5, %6 in 1 : vector<8x1x512xbf16>, vector<8x4x512xbf16>, vector<8x1x512xbf16>, vector<8x10x512xbf16> -> vector<8x16x512xbf16>
    %c0_10 = arith.constant 0 : index
    %c0_11 = arith.constant 0 : index
    %c0_12 = arith.constant 0 : index
    %8 = vector.load %arg5[%c0_10, %c0_11, %c0_12] : memref<8x16x512xbf16, #tpu.memory_space<vmem>>, vector<8x16x512xbf16>
    tpu.vector_store %arg5[%c0_10, %c0_11, %c0_12], %7 {strides = array<i32>} : memref<8x16x512xbf16, #tpu.memory_space<vmem>>, vector<8x16x512xbf16>,
    return
  }
  func.func @transform_0(%arg0: i32) -> (i32, i32, i32) {
    %c0_i32 = arith.constant 0 : i32
    %c0_i32_0 = arith.constant 0 : i32
    %c0_i32_1 = arith.constant 0 : i32
    return %arg0, %c0_i32, %c0_i32_0 : i32, i32, i32
  }
  func.func @transform_1(%arg0: i32) -> (i32, i32) {
    %c0_i32 = arith.constant 0 : i32
    %c0_i32_0 = arith.constant 0 : i32
    %c0_i32_1 = arith.constant 0 : i32
    return %c0_i32, %c0_i32_0 : i32, i32
  }
  func.func @transform_2(%arg0: i32) -> (i32, i32, i32) {
    %c0_i32 = arith.constant 0 : i32
    %c0_i32_0 = arith.constant 0 : i32
    %c0_i32_1 = arith.constant 0 : i32
    return %arg0, %c0_i32, %c0_i32_0 : i32, i32, i32
  }
  func.func @transform_3(%arg0: i32) -> (i32, i32, i32) {
    %c0_i32 = arith.constant 0 : i32
    %c0_i32_0 = arith.constant 0 : i32
    %c0_i32_1 = arith.constant 0 : i32
    return %arg0, %c0_i32, %c0_i32_0 : i32, i32, i32
  }
  func.func @transform_4(%arg0: i32) -> (i32, i32, i32) {
    %c0_i32 = arith.constant 0 : i32
    %c0_i32_0 = arith.constant 0 : i32
    %c0_i32_1 = arith.constant 0 : i32
    return %arg0, %c0_i32, %c0_i32_0 : i32, i32, i32
  }
}

</mosaic_0001>

<llo_original>
// kernel: tpu_custom_call.1
$region0: #{tpu_custom_call.1}
  #allocation0 [shape = 'u32[]', space=smem, size = 0x4, offset = 0x4, fixed_abs, tag = 'smem constant byte address 0x4 - core index']
  #allocation1 [shape = 'u32[72,128]{1,0:T(1,128)}', space=vmem, size = 0x9000, scoped, tag = 'internal scratch']
  %s0 = inlined_call_operand.vmem [shape: bf16[8,1,512], index: 0, kind: input, shape index: {}]
  %s1 = inlined_call_operand.vmem [shape: bf16[4,512], index: 1, kind: input, shape index: {}]
  %s2 = inlined_call_operand.vmem [shape: bf16[8,1,512], index: 2, kind: input, shape index: {}]
  %s3 = inlined_call_operand.vmem [shape: bf16[8,10,512], index: 3, kind: input, shape index: {}]
  %s4 = inlined_call_operand.hbm [shape: bf16[8,16,512], index: 4, kind: output, shape index: {}]
  %s5 = sld [smem:[#allocation0]]
  $region26: #{tpu_custom_call.1} parent=0
    _
  %s7 = ssub.s32 1, %s5
  %s8 = scalar_select 0, %s7, %s5
  $region1: #{tpu_custom_call.1} parent=0
    #allocation2 [shape = 'u8[131072]{0}', space=vmem, size = 0x20000, scoped, tag = 'output window, operand 0, single buffered']
    #allocation3 [shape = 's32[1]{0}', space=sflag, size = 0x4, scoped, tag = 'scoped memory for tpu_custom_call.1']
    %9 = vsyncpa [#allocation3], 0
    // Predicated region
    $region2: #{tpu_custom_call.1} parent=1 // pred_check
      _
    $region3: #{tpu_custom_call.1} parent=1 // pred_check_branch
      %11 = sbr.rel (0) target = $region5
    $region4: #{tpu_custom_call.1} parent=1 // pred_region
      _
    $region5: #{tpu_custom_call.1} parent=1 // pred_fallthru
      _
    // Predicated region
    $region6: #{tpu_custom_call.1} parent=1 // pred_check
      _
    $region7: #{tpu_custom_call.1} parent=1 // pred_check_branch
      %13 = sbr.rel (0) target = $region9
    $region8: #{tpu_custom_call.1} parent=1 // pred_region
      _
    $region9: #{tpu_custom_call.1} parent=1 // pred_fallthru
      _
    // Predicated region
    $region10: #{tpu_custom_call.1} parent=1 // pred_check
      _
    $region11: #{tpu_custom_call.1} parent=1 // pred_check_branch
      %15 = sbr.rel (0) target = $region13
    $region12: #{tpu_custom_call.1} parent=1 // pred_region
      _
    $region13: #{tpu_custom_call.1} parent=1 // pred_fallthru
      _
    // Predicated region
    $region14: #{tpu_custom_call.1} parent=1 // pred_check
      _
    $region15: #{tpu_custom_call.1} parent=1 // pred_check_branch
      %17 = sbr.rel (0) target = $region17
    $region16: #{tpu_custom_call.1} parent=1 // pred_region
      _
    $region17: #{tpu_custom_call.1} parent=1 // pred_fallthru
      _
    %v18 = vld [vmem:[%s1] sm:$0xff]
    %v19 = vld [vmem:[%s0] sm:$0xf]
    %v20 = vld [vmem:[%s0 + $0x4] sm:$0xf]
    %v21 = vld [vmem:[%s0 + $0x8] sm:$0xf]
    %v22 = vld [vmem:[%s0 + $0xc] sm:$0xf]
    %v23 = vld [vmem:[%s0 + $0x10] sm:$0xf]
    %v24 = vld [vmem:[%s0 + $0x14] sm:$0xf]
    %v25 = vld [vmem:[%s0 + $0x18] sm:$0xf]
    %v26 = vld [vmem:[%s0 + $0x1c] sm:$0xf]
    %v27 = vld [vmem:[%s2] sm:$0xf]
    %v28 = vld [vmem:[%s2 + $0x4] sm:$0xf]
    %v29 = vld [vmem:[%s2 + $0x8] sm:$0xf]
    %v30 = vld [vmem:[%s2 + $0xc] sm:$0xf]
    %v31 = vld [vmem:[%s2 + $0x10] sm:$0xf]
    %v32 = vld [vmem:[%s2 + $0x14] sm:$0xf]
    %v33 = vld [vmem:[%s2 + $0x18] sm:$0xf]
    %v34 = vld [vmem:[%s2 + $0x1c] sm:$0xf]
    %v35 = vld [vmem:[%s3] sm:$0xff]
    %v36 = vld [vmem:[%s3 + $0x8] sm:$0xff]
    %v37 = vld [vmem:[%s3 + $0x10] sm:$0x11]
    %v38 = vld [vmem:[%s3 + $0x18] sm:$0x11]
    %v39 = vld [vmem:[%s3 + $0x20] sm:$0xff]
    %v40 = vld [vmem:[%s3 + $0x28] sm:$0xff]
    %v41 = vld [vmem:[%s3 + $0x30] sm:$0x11]
    %v42 = vld [vmem:[%s3 + $0x38] sm:$0x11]
    %v43 = vld [vmem:[%s3 + $0x40] sm:$0xff]
    %v44 = vld [vmem:[%s3 + $0x48] sm:$0xff]
    %v45 = vld [vmem:[%s3 + $0x50] sm:$0x11]
    %v46 = vld [vmem:[%s3 + $0x58] sm:$0x11]
    %v47 = vld [vmem:[%s3 + $0x60] sm:$0xff]
    %v48 = vld [vmem:[%s3 + $0x68] sm:$0xff]
    %v49 = vld [vmem:[%s3 + $0x70] sm:$0x11]
    %v50 = vld [vmem:[%s3 + $0x78] sm:$0x11]
    %v51 = vld [vmem:[%s3 + $0x80] sm:$0xff]
    %v52 = vld [vmem:[%s3 + $0x88] sm:$0xff]
    %v53 = vld [vmem:[%s3 + $0x90] sm:$0x11]
    %v54 = vld [vmem:[%s3 + $0x98] sm:$0x11]
    %v55 = vld [vmem:[%s3 + $0xa0] sm:$0xff]
    %v56 = vld [vmem:[%s3 + $0xa8] sm:$0xff]
    %v57 = vld [vmem:[%s3 + $0xb0] sm:$0x11]
    %v58 = vld [vmem:[%s3 + $0xb8] sm:$0x11]
    %v59 = vld [vmem:[%s3 + $0xc0] sm:$0xff]
    %v60 = vld [vmem:[%s3 + $0xc8] sm:$0xff]
    %v61 = vld [vmem:[%s3 + $0xd0] sm:$0x11]
    %v62 = vld [vmem:[%s3 + $0xd8] sm:$0x11]
    %v63 = vld [vmem:[%s3 + $0xe0] sm:$0xff]
    %v64 = vld [vmem:[%s3 + $0xe8] sm:$0xff]
    %v65 = vld [vmem:[%s3 + $0xf0] sm:$0x11]
    %v66 = vld [vmem:[%s3 + $0xf8] sm:$0x11]
    %68 = vst [vmem:[#allocation1] ss:$9 sm:$0xff] %v19
    %v69 = vld [vmem:[#allocation1] sm:$0xff]
    %v70 = vld [vmem:[#allocation1 + $0x9] sm:$0xff]
    %v71 = vld [vmem:[#allocation1 + $0x12] sm:$0xff]
    %v72 = vld [vmem:[#allocation1 + $0x1b] sm:$0xff]
    %74 = vst [vmem:[#allocation1] ss:$9 sm:$0xff] %v20
    %v75 = vld [vmem:[#allocation1] sm:$0xff]
    %v76 = vld [vmem:[#allocation1 + $0x9] sm:$0xff]
    %v77 = vld [vmem:[#allocation1 + $0x12] sm:$0xff]
    %v78 = vld [vmem:[#allocation1 + $0x1b] sm:$0xff]
    %80 = vst [vmem:[#allocation1] ss:$9 sm:$0xff] %v21
    %v81 = vld [vmem:[#allocation1] sm:$0xff]
    %v82 = vld [vmem:[#allocation1 + $0x9] sm:$0xff]
    %v83 = vld [vmem:[#allocation1 + $0x12] sm:$0xff]
    %v84 = vld [vmem:[#allocation1 + $0x1b] sm:$0xff]
    %86 = vst [vmem:[#allocation1] ss:$9 sm:$0xff] %v22
    %v87 = vld [vmem:[#allocation1] sm:$0xff]
    %v88 = vld [vmem:[#allocation1 + $0x9] sm:$0xff]
    %v89 = vld [vmem:[#allocation1 + $0x12] sm:$0xff]
    %v90 = vld [vmem:[#allocation1 + $0x1b] sm:$0xff]
    %92 = vst [vmem:[#allocation1] ss:$9 sm:$0xff] %v23
    %v93 = vld [vmem:[#allocation1] sm:$0xff]
    %v94 = vld [vmem:[#allocation1 + $0x9] sm:$0xff]
    %v95 = vld [vmem:[#allocation1 + $0x12] sm:$0xff]
    %v96 = vld [vmem:[#allocation1 + $0x1b] sm:$0xff]
    %98 = vst [vmem:[#allocation1] ss:$9 sm:$0xff] %v24
    %v99 = vld [vmem:[#allocation1] sm:$0xff]
    %v100 = vld [vmem:[#allocation1 + $0x9] sm:$0xff]
    %v101 = vld [vmem:[#allocation1 + $0x12] sm:$0xff]
    %v102 = vld [vmem:[#allocation1 + $0x1b] sm:$0xff]
    %104 = vst [vmem:[#allocation1] ss:$9 sm:$0xff] %v25
    %v105 = vld [vmem:[#allocation1] sm:$0xff]
    %v106 = vld [vmem:[#allocation1 + $0x9] sm:$0xff]
    %v107 = vld [vmem:[#allocation1 + $0x12] sm:$0xff]
    %v108 = vld [vmem:[#allocation1 + $0x1b] sm:$0xff]
    %110 = vst [vmem:[#allocation1] ss:$9 sm:$0xff] %v26
    %v111 = vld [vmem:[#allocation1] sm:$0xff]
    %v112 = vld [vmem:[#allocation1 + $0x9] sm:$0xff]
    %v113 = vld [vmem:[#allocation1 + $0x12] sm:$0xff]
    %v114 = vld [vmem:[#allocation1 + $0x1b] sm:$0xff]
    %148 = vst [vmem:[#allocation1] ss:$4 sm:$0xff] %v18
    %v149 = vld.sshfl [vmem:[#allocation1] sm:$0xff pattern:$0x73625140]
    %v150 = vld.sshfl [vmem:[#allocation1 + $0x8] sm:$0xff pattern:$0x73625140]
    %v151 = vld.sshfl [vmem:[#allocation1 + $0x10] sm:$0xff pattern:$0x73625140]
    %v152 = vld.sshfl [vmem:[#allocation1 + $0x18] sm:$0xff pattern:$0x73625140]
    %s153 = scalar_lea.vmem [#allocation1], 32
    %154 = vst [vmem:[%s153] ss:$4 sm:$0xff] %v18
    %v155 = vld.sshfl [vmem:[#allocation1 + $0x20] sm:$0xff pattern:$0x73625140]
    %v156 = vld.sshfl [vmem:[#allocation1 + $0x28] sm:$0xff pattern:$0x73625140]
    %v157 = vld.sshfl [vmem:[#allocation1 + $0x30] sm:$0xff pattern:$0x73625140]
    %v158 = vld.sshfl [vmem:[#allocation1 + $0x38] sm:$0xff pattern:$0x73625140]
    %159 = vst [vmem:[#allocation1] ss:$4 sm:$0xff] %v18
    %v160 = vld.sshfl [vmem:[#allocation1] sm:$0xff pattern:$0x73625140]
    %v161 = vld.sshfl [vmem:[#allocation1 + $0x8] sm:$0xff pattern:$0x73625140]
    %v162 = vld.sshfl [vmem:[#allocation1 + $0x10] sm:$0xff pattern:$0x73625140]
    %v163 = vld.sshfl [vmem:[#allocation1 + $0x18] sm:$0xff pattern:$0x73625140]
    %164 = vst [vmem:[%s153] ss:$4 sm:$0xff] %v18
    %v165 = vld.sshfl [vmem:[#allocation1 + $0x20] sm:$0xff pattern:$0x73625140]
    %v166 = vld.sshfl [vmem:[#allocation1 + $0x28] sm:$0xff pattern:$0x73625140]
    %v167 = vld.sshfl [vmem:[#allocation1 + $0x30] sm:$0xff pattern:$0x73625140]
    %v168 = vld.sshfl [vmem:[#allocation1 + $0x38] sm:$0xff pattern:$0x73625140]
    %169 = vst [vmem:[#allocation1] ss:$4 sm:$0xff] %v18
    %v170 = vld.sshfl [vmem:[#allocation1] sm:$0xff pattern:$0x73625140]
    %v171 = vld.sshfl [vmem:[#allocation1 + $0x8] sm:$0xff pattern:$0x73625140]
    %v172 = vld.sshfl [vmem:[#allocation1 + $0x10] sm:$0xff pattern:$0x73625140]
    %v173 = vld.sshfl [vmem:[#allocation1 + $0x18] sm:$0xff pattern:$0x73625140]
    %174 = vst [vmem:[%s153] ss:$4 sm:$0xff] %v18
    %v175 = vld.sshfl [vmem:[#allocation1 + $0x20] sm:$0xff pattern:$0x73625140]
    %v176 = vld.sshfl [vmem:[#allocation1 + $0x28] sm:$0xff pattern:$0x73625140]
    %v177 = vld.sshfl [vmem:[#allocation1 + $0x30] sm:$0xff pattern:$0x73625140]
    %v178 = vld.sshfl [vmem:[#allocation1 + $0x38] sm:$0xff pattern:$0x73625140]
    %179 = vst [vmem:[#allocation1] ss:$4 sm:$0xff] %v18
    %v180 = vld.sshfl [vmem:[#allocation1] sm:$0xff pattern:$0x73625140]
    %v181 = vld.sshfl [vmem:[#allocation1 + $0x8] sm:$0xff pattern:$0x73625140]
    %v182 = vld.sshfl [vmem:[#allocation1 + $0x10] sm:$0xff pattern:$0x73625140]
    %v183 = vld.sshfl [vmem:[#allocation1 + $0x18] sm:$0xff pattern:$0x73625140]
    %184 = vst [vmem:[%s153] ss:$4 sm:$0xff] %v18
    %v185 = vld.sshfl [vmem:[#allocation1 + $0x20] sm:$0xff pattern:$0x73625140]
    %v186 = vld.sshfl [vmem:[#allocation1 + $0x28] sm:$0xff pattern:$0x73625140]
    %v187 = vld.sshfl [vmem:[#allocation1 + $0x30] sm:$0xff pattern:$0x73625140]
    %v188 = vld.sshfl [vmem:[#allocation1 + $0x38] sm:$0xff pattern:$0x73625140]
    %v189 = vshrl.u32 %v149, 16
    %v191 = vrot.slane %v189, 7
    %v192 = vshll.u32 %v149, 16
    %v194 = vor.u32 %v191, %v192
    %v195 = vshrl.u32 %v150, 16
    %v197 = vrot.slane %v195, 7
    %v198 = vshll.u32 %v150, 16
    %v200 = vor.u32 %v197, %v198
    %v201 = vshrl.u32 %v151, 16
    %v203 = vrot.slane %v201, 7
    %v204 = vshll.u32 %v151, 16
    %v206 = vor.u32 %v203, %v204
    %v207 = vshrl.u32 %v152, 16
    %v209 = vrot.slane %v207, 7
    %v210 = vshll.u32 %v152, 16
    %v212 = vor.u32 %v209, %v210
    %v213 = vshrl.u32 %v155, 16
    %v215 = vrot.slane %v213, 7
    %v216 = vshll.u32 %v155, 16
    %v218 = vor.u32 %v215, %v216
    %v219 = vshrl.u32 %v156, 16
    %v221 = vrot.slane %v219, 7
    %v222 = vshll.u32 %v156, 16
    %v224 = vor.u32 %v221, %v222
    %v225 = vshrl.u32 %v157, 16
    %v227 = vrot.slane %v225, 7
    %v228 = vshll.u32 %v157, 16
    %v230 = vor.u32 %v227, %v228
    %v231 = vshrl.u32 %v158, 16
    %v233 = vrot.slane %v231, 7
    %v234 = vshll.u32 %v158, 16
    %v236 = vor.u32 %v233, %v234
    %v237 = vshrl.u32 %v160, 16
    %v239 = vrot.slane %v237, 7
    %v240 = vshll.u32 %v160, 16
    %v242 = vor.u32 %v239, %v240
    %v243 = vshrl.u32 %v161, 16
    %v245 = vrot.slane %v243, 7
    %v246 = vshll.u32 %v161, 16
    %v248 = vor.u32 %v245, %v246
    %v249 = vshrl.u32 %v162, 16
    %v251 = vrot.slane %v249, 7
    %v252 = vshll.u32 %v162, 16
    %v254 = vor.u32 %v251, %v252
    %v255 = vshrl.u32 %v163, 16
    %v257 = vrot.slane %v255, 7
    %v258 = vshll.u32 %v163, 16
    %v260 = vor.u32 %v257, %v258
    %v261 = vshrl.u32 %v165, 16
    %v263 = vrot.slane %v261, 7
    %v264 = vshll.u32 %v165, 16
    %v266 = vor.u32 %v263, %v264
    %v267 = vshrl.u32 %v166, 16
    %v269 = vrot.slane %v267, 7
    %v270 = vshll.u32 %v166, 16
    %v272 = vor.u32 %v269, %v270
    %v273 = vshrl.u32 %v167, 16
    %v275 = vrot.slane %v273, 7
    %v276 = vshll.u32 %v167, 16
    %v278 = vor.u32 %v275, %v276
    %v279 = vshrl.u32 %v168, 16
    %v281 = vrot.slane %v279, 7
    %v282 = vshll.u32 %v168, 16
    %v284 = vor.u32 %v281, %v282
    %v285 = vshrl.u32 %v170, 16
    %v287 = vrot.slane %v285, 7
    %v288 = vshll.u32 %v170, 16
    %v290 = vor.u32 %v287, %v288
    %v291 = vshrl.u32 %v171, 16
    %v293 = vrot.slane %v291, 7
    %v294 = vshll.u32 %v171, 16
    %v296 = vor.u32 %v293, %v294
    %v297 = vshrl.u32 %v172, 16
    %v299 = vrot.slane %v297, 7
    %v300 = vshll.u32 %v172, 16
    %v302 = vor.u32 %v299, %v300
    %v303 = vshrl.u32 %v173, 16
    %v305 = vrot.slane %v303, 7
    %v306 = vshll.u32 %v173, 16
    %v308 = vor.u32 %v305, %v306
    %v309 = vshrl.u32 %v175, 16
    %v311 = vrot.slane %v309, 7
    %v312 = vshll.u32 %v175, 16
    %v314 = vor.u32 %v311, %v312
    %v315 = vshrl.u32 %v176, 16
    %v317 = vrot.slane %v315, 7
    %v318 = vshll.u32 %v176, 16
    %v320 = vor.u32 %v317, %v318
    %v321 = vshrl.u32 %v177, 16
    %v323 = vrot.slane %v321, 7
    %v324 = vshll.u32 %v177, 16
    %v326 = vor.u32 %v323, %v324
    %v327 = vshrl.u32 %v178, 16
    %v329 = vrot.slane %v327, 7
    %v330 = vshll.u32 %v178, 16
    %v332 = vor.u32 %v329, %v330
    %v333 = vshrl.u32 %v180, 16
    %v335 = vrot.slane %v333, 7
    %v336 = vshll.u32 %v180, 16
    %v338 = vor.u32 %v335, %v336
    %v339 = vshrl.u32 %v181, 16
    %v341 = vrot.slane %v339, 7
    %v342 = vshll.u32 %v181, 16
    %v344 = vor.u32 %v341, %v342
    %v345 = vshrl.u32 %v182, 16
    %v347 = vrot.slane %v345, 7
    %v348 = vshll.u32 %v182, 16
    %v350 = vor.u32 %v347, %v348
    %v351 = vshrl.u32 %v183, 16
    %v353 = vrot.slane %v351, 7
    %v354 = vshll.u32 %v183, 16
    %v356 = vor.u32 %v353, %v354
    %v357 = vshrl.u32 %v185, 16
    %v359 = vrot.slane %v357, 7
    %v360 = vshll.u32 %v185, 16
    %v362 = vor.u32 %v359, %v360
    %v363 = vshrl.u32 %v186, 16
    %v365 = vrot.slane %v363, 7
    %v366 = vshll.u32 %v186, 16
    %v368 = vor.u32 %v365, %v366
    %v369 = vshrl.u32 %v187, 16
    %v371 = vrot.slane %v369, 7
    %v372 = vshll.u32 %v187, 16
    %v374 = vor.u32 %v371, %v372
    %v375 = vshrl.u32 %v188, 16
    %v377 = vrot.slane %v375, 7
    %v378 = vshll.u32 %v188, 16
    %v380 = vor.u32 %v377, %v378
    %414 = vst [vmem:[#allocation1] ss:$9 sm:$0xff] %v27
    %v415 = vld [vmem:[#allocation1] sm:$0xff]
    %v416 = vld [vmem:[#allocation1 + $0x9] sm:$0xff]
    %v417 = vld [vmem:[#allocation1 + $0x12] sm:$0xff]
    %v418 = vld [vmem:[#allocation1 + $0x1b] sm:$0xff]
    %420 = vst [vmem:[#allocation1] ss:$9 sm:$0xff] %v28
    %v421 = vld [vmem:[#allocation1] sm:$0xff]
    %v422 = vld [vmem:[#allocation1 + $0x9] sm:$0xff]
    %v423 = vld [vmem:[#allocation1 + $0x12] sm:$0xff]
    %v424 = vld [vmem:[#allocation1 + $0x1b] sm:$0xff]
    %426 = vst [vmem:[#allocation1] ss:$9 sm:$0xff] %v29
    %v427 = vld [vmem:[#allocation1] sm:$0xff]
    %v428 = vld [vmem:[#allocation1 + $0x9] sm:$0xff]
    %v429 = vld [vmem:[#allocation1 + $0x12] sm:$0xff]
    %v430 = vld [vmem:[#allocation1 + $0x1b] sm:$0xff]
    %432 = vst [vmem:[#allocation1] ss:$9 sm:$0xff] %v30
    %v433 = vld [vmem:[#allocation1] sm:$0xff]
    %v434 = vld [vmem:[#allocation1 + $0x9] sm:$0xff]
    %v435 = vld [vmem:[#allocation1 + $0x12] sm:$0xff]
    %v436 = vld [vmem:[#allocation1 + $0x1b] sm:$0xff]
    %438 = vst [vmem:[#allocation1] ss:$9 sm:$0xff] %v31
    %v439 = vld [vmem:[#allocation1] sm:$0xff]
    %v440 = vld [vmem:[#allocation1 + $0x9] sm:$0xff]
    %v441 = vld [vmem:[#allocation1 + $0x12] sm:$0xff]
    %v442 = vld [vmem:[#allocation1 + $0x1b] sm:$0xff]
    %444 = vst [vmem:[#allocation1] ss:$9 sm:$0xff] %v32
    %v445 = vld [vmem:[#allocation1] sm:$0xff]
    %v446 = vld [vmem:[#allocation1 + $0x9] sm:$0xff]
    %v447 = vld [vmem:[#allocation1 + $0x12] sm:$0xff]
    %v448 = vld [vmem:[#allocation1 + $0x1b] sm:$0xff]
    %450 = vst [vmem:[#allocation1] ss:$9 sm:$0xff] %v33
    %v451 = vld [vmem:[#allocation1] sm:$0xff]
    %v452 = vld [vmem:[#allocation1 + $0x9] sm:$0xff]
    %v453 = vld [vmem:[#allocation1 + $0x12] sm:$0xff]
    %v454 = vld [vmem:[#allocation1 + $0x1b] sm:$0xff]
    %456 = vst [vmem:[#allocation1] ss:$9 sm:$0xff] %v34
    %v457 = vld [vmem:[#allocation1] sm:$0xff]
    %v458 = vld [vmem:[#allocation1 + $0x9] sm:$0xff]
    %v459 = vld [vmem:[#allocation1 + $0x12] sm:$0xff]
    %v460 = vld [vmem:[#allocation1 + $0x1b] sm:$0xff]
    %v461 = vshll.u32 %v415, 16
    %v463 = vrot.slane %v461, 6
    %v464 = vshll.u32 %v416, 16
    %v466 = vrot.slane %v464, 6
    %v467 = vshll.u32 %v417, 16
    %v469 = vrot.slane %v467, 6
    %v470 = vshll.u32 %v418, 16
    %v472 = vrot.slane %v470, 6
    %v473 = vshll.u32 %v421, 16
    %v475 = vrot.slane %v473, 6
    %v476 = vshll.u32 %v422, 16
    %v478 = vrot.slane %v476, 6
    %v479 = vshll.u32 %v423, 16
    %v481 = vrot.slane %v479, 6
    %v482 = vshll.u32 %v424, 16
    %v484 = vrot.slane %v482, 6
    %v485 = vshll.u32 %v427, 16
    %v487 = vrot.slane %v485, 6
    %v488 = vshll.u32 %v428, 16
    %v490 = vrot.slane %v488, 6
    %v491 = vshll.u32 %v429, 16
    %v493 = vrot.slane %v491, 6
    %v494 = vshll.u32 %v430, 16
    %v496 = vrot.slane %v494, 6
    %v497 = vshll.u32 %v433, 16
    %v499 = vrot.slane %v497, 6
    %v500 = vshll.u32 %v434, 16
    %v502 = vrot.slane %v500, 6
    %v503 = vshll.u32 %v435, 16
    %v505 = vrot.slane %v503, 6
    %v506 = vshll.u32 %v436, 16
    %v508 = vrot.slane %v506, 6
    %v509 = vshll.u32 %v439, 16
    %v511 = vrot.slane %v509, 6
    %v512 = vshll.u32 %v440, 16
    %v514 = vrot.slane %v512, 6
    %v515 = vshll.u32 %v441, 16
    %v517 = vrot.slane %v515, 6
    %v518 = vshll.u32 %v442, 16
    %v520 = vrot.slane %v518, 6
    %v521 = vshll.u32 %v445, 16
    %v523 = vrot.slane %v521, 6
    %v524 = vshll.u32 %v446, 16
    %v526 = vrot.slane %v524, 6
    %v527 = vshll.u32 %v447, 16
    %v529 = vrot.slane %v527, 6
    %v530 = vshll.u32 %v448, 16
    %v532 = vrot.slane %v530, 6
    %v533 = vshll.u32 %v451, 16
    %v535 = vrot.slane %v533, 6
    %v536 = vshll.u32 %v452, 16
    %v538 = vrot.slane %v536, 6
    %v539 = vshll.u32 %v453, 16
    %v541 = vrot.slane %v539, 6
    %v542 = vshll.u32 %v454, 16
    %v544 = vrot.slane %v542, 6
    %v545 = vshll.u32 %v457, 16
    %v547 = vrot.slane %v545, 6
    %v548 = vshll.u32 %v458, 16
    %v550 = vrot.slane %v548, 6
    %v551 = vshll.u32 %v459, 16
    %v553 = vrot.slane %v551, 6
    %v554 = vshll.u32 %v460, 16
    %v556 = vrot.slane %v554, 6
    %v621 = vunpack.c.l.b16 %v35
    %v622 = vunpack.c.h.b16 %v35
    %v623 = vunpack.c.l.b16 %v36
    %v624 = vunpack.c.h.b16 %v36
    %v625 = vunpack.c.l.b16 %v37
    %v626 = vunpack.c.h.b16 %v37
    %v627 = vunpack.c.l.b16 %v38
    %v628 = vunpack.c.h.b16 %v38
    %v629 = vunpack.c.l.b16 %v39
    %v630 = vunpack.c.h.b16 %v39
    %v631 = vunpack.c.l.b16 %v40
    %v632 = vunpack.c.h.b16 %v40
    %v633 = vunpack.c.l.b16 %v41
    %v634 = vunpack.c.h.b16 %v41
    %v635 = vunpack.c.l.b16 %v42
    %v636 = vunpack.c.h.b16 %v42
    %v637 = vunpack.c.l.b16 %v43
    %v638 = vunpack.c.h.b16 %v43
    %v639 = vunpack.c.l.b16 %v44
    %v640 = vunpack.c.h.b16 %v44
    %v641 = vunpack.c.l.b16 %v45
    %v642 = vunpack.c.h.b16 %v45
    %v643 = vunpack.c.l.b16 %v46
    %v644 = vunpack.c.h.b16 %v46
    %v645 = vunpack.c.l.b16 %v47
    %v646 = vunpack.c.h.b16 %v47
    %v647 = vunpack.c.l.b16 %v48
    %v648 = vunpack.c.h.b16 %v48
    %v649 = vunpack.c.l.b16 %v49
    %v650 = vunpack.c.h.b16 %v49
    %v651 = vunpack.c.l.b16 %v50
    %v652 = vunpack.c.h.b16 %v50
    %v653 = vunpack.c.l.b16 %v51
    %v654 = vunpack.c.h.b16 %v51
    %v655 = vunpack.c.l.b16 %v52
    %v656 = vunpack.c.h.b16 %v52
    %v657 = vunpack.c.l.b16 %v53
    %v658 = vunpack.c.h.b16 %v53
    %v659 = vunpack.c.l.b16 %v54
    %v660 = vunpack.c.h.b16 %v54
    %v661 = vunpack.c.l.b16 %v55
    %v662 = vunpack.c.h.b16 %v55
    %v663 = vunpack.c.l.b16 %v56
    %v664 = vunpack.c.h.b16 %v56
    %v665 = vunpack.c.l.b16 %v57
    %v666 = vunpack.c.h.b16 %v57
    %v667 = vunpack.c.l.b16 %v58
    %v668 = vunpack.c.h.b16 %v58
    %v669 = vunpack.c.l.b16 %v59
    %v670 = vunpack.c.h.b16 %v59
    %v671 = vunpack.c.l.b16 %v60
    %v672 = vunpack.c.h.b16 %v60
    %v673 = vunpack.c.l.b16 %v61
    %v674 = vunpack.c.h.b16 %v61
    %v675 = vunpack.c.l.b16 %v62
    %v676 = vunpack.c.h.b16 %v62
    %v677 = vunpack.c.l.b16 %v63
    %v678 = vunpack.c.h.b16 %v63
    %v679 = vunpack.c.l.b16 %v64
    %v680 = vunpack.c.h.b16 %v64
    %v681 = vunpack.c.l.b16 %v65
    %v682 = vunpack.c.h.b16 %v65
    %v683 = vunpack.c.l.b16 %v66
    %v684 = vunpack.c.h.b16 %v66
    %v685 = vpack.c.b16 %v625, %v621
    %v686 = vpack.c.b16 %v626, %v622
    %v687 = vpack.c.b16 %v627, %v623
    %v688 = vpack.c.b16 %v628, %v624
    %v689 = vpack.c.b16 %v633, %v629
    %v690 = vpack.c.b16 %v634, %v630
    %v691 = vpack.c.b16 %v635, %v631
    %v692 = vpack.c.b16 %v636, %v632
    %v693 = vpack.c.b16 %v641, %v637
    %v694 = vpack.c.b16 %v642, %v638
    %v695 = vpack.c.b16 %v643, %v639
    %v696 = vpack.c.b16 %v644, %v640
    %v697 = vpack.c.b16 %v649, %v645
    %v698 = vpack.c.b16 %v650, %v646
    %v699 = vpack.c.b16 %v651, %v647
    %v700 = vpack.c.b16 %v652, %v648
    %v701 = vpack.c.b16 %v657, %v653
    %v702 = vpack.c.b16 %v658, %v654
    %v703 = vpack.c.b16 %v659, %v655
    %v704 = vpack.c.b16 %v660, %v656
    %v705 = vpack.c.b16 %v665, %v661
    %v706 = vpack.c.b16 %v666, %v662
    %v707 = vpack.c.b16 %v667, %v663
    %v708 = vpack.c.b16 %v668, %v664
    %v709 = vpack.c.b16 %v673, %v669
    %v710 = vpack.c.b16 %v674, %v670
    %v711 = vpack.c.b16 %v675, %v671
    %v712 = vpack.c.b16 %v676, %v672
    %v713 = vpack.c.b16 %v681, %v677
    %v714 = vpack.c.b16 %v682, %v678
    %v715 = vpack.c.b16 %v683, %v679
    %v716 = vpack.c.b16 %v684, %v680
    %v717 = vrot.slane %v685, 5
    %v718 = vrot.slane %v686, 5
    %v719 = vrot.slane %v687, 5
    %v720 = vrot.slane %v688, 5
    %v721 = vrot.slane %v689, 5
    %v722 = vrot.slane %v690, 5
    %v723 = vrot.slane %v691, 5
    %v724 = vrot.slane %v692, 5
    %v725 = vrot.slane %v693, 5
    %v726 = vrot.slane %v694, 5
    %v727 = vrot.slane %v695, 5
    %v728 = vrot.slane %v696, 5
    %v729 = vrot.slane %v697, 5
    %v730 = vrot.slane %v698, 5
    %v731 = vrot.slane %v699, 5
    %v732 = vrot.slane %v700, 5
    %v733 = vrot.slane %v701, 5
    %v734 = vrot.slane %v702, 5
    %v735 = vrot.slane %v703, 5
    %v736 = vrot.slane %v704, 5
    %v737 = vrot.slane %v705, 5
    %v738 = vrot.slane %v706, 5
    %v739 = vrot.slane %v707, 5
    %v740 = vrot.slane %v708, 5
    %v741 = vrot.slane %v709, 5
    %v742 = vrot.slane %v710, 5
    %v743 = vrot.slane %v711, 5
    %v744 = vrot.slane %v712, 5
    %v745 = vrot.slane %v713, 5
    %v746 = vrot.slane %v714, 5
    %v747 = vrot.slane %v715, 5
    %v748 = vrot.slane %v716, 5
    %vm749 = vcmask 1040384
    %vm750 = vsmask.f32 256
    %vm751 = vmand %vm749, %vm750
    %v752 = vsel %vm751, %v69, %v194
    %v753 = vsel %vm751, %v70, %v200
    %v754 = vsel %vm751, %v71, %v206
    %v755 = vsel %vm751, %v72, %v212
    %v756 = vsel %vm751, %v75, %v218
    %v757 = vsel %vm751, %v76, %v224
    %v758 = vsel %vm751, %v77, %v230
    %v759 = vsel %vm751, %v78, %v236
    %v760 = vsel %vm751, %v81, %v242
    %v761 = vsel %vm751, %v82, %v248
    %v762 = vsel %vm751, %v83, %v254
    %v763 = vsel %vm751, %v84, %v260
    %v764 = vsel %vm751, %v87, %v266
    %v765 = vsel %vm751, %v88, %v272
    %v766 = vsel %vm751, %v89, %v278
    %v767 = vsel %vm751, %v90, %v284
    %v768 = vsel %vm751, %v93, %v290
    %v769 = vsel %vm751, %v94, %v296
    %v770 = vsel %vm751, %v95, %v302
    %v771 = vsel %vm751, %v96, %v308
    %v772 = vsel %vm751, %v99, %v314
    %v773 = vsel %vm751, %v100, %v320
    %v774 = vsel %vm751, %v101, %v326
    %v775 = vsel %vm751, %v102, %v332
    %v776 = vsel %vm751, %v105, %v338
    %v777 = vsel %vm751, %v106, %v344
    %v778 = vsel %vm751, %v107, %v350
    %v779 = vsel %vm751, %v108, %v356
    %v780 = vsel %vm751, %v111, %v362
    %v781 = vsel %vm751, %v112, %v368
    %v782 = vsel %vm751, %v113, %v374
    %v783 = vsel %vm751, %v114, %v380
    %vm784 = vcmask 1042432
    %vm785 = vsmask.f32 2304
    %vm786 = vmand %vm784, %vm785
    %v787 = vsel %vm786, %v752, %v463
    %v788 = vsel %vm786, %v753, %v466
    %v789 = vsel %vm786, %v754, %v469
    %v790 = vsel %vm786, %v755, %v472
    %v791 = vsel %vm786, %v756, %v475
    %v792 = vsel %vm786, %v757, %v478
    %v793 = vsel %vm786, %v758, %v481
    %v794 = vsel %vm786, %v759, %v484
    %v795 = vsel %vm786, %v760, %v487
    %v796 = vsel %vm786, %v761, %v490
    %v797 = vsel %vm786, %v762, %v493
    %v798 = vsel %vm786, %v763, %v496
    %v799 = vsel %vm786, %v764, %v499
    %v800 = vsel %vm786, %v765, %v502
    %v801 = vsel %vm786, %v766, %v505
    %v802 = vsel %vm786, %v767, %v508
    %v803 = vsel %vm786, %v768, %v511
    %v804 = vsel %vm786, %v769, %v514
    %v805 = vsel %vm786, %v770, %v517
    %v806 = vsel %vm786, %v771, %v520
    %v807 = vsel %vm786, %v772, %v523
    %v808 = vsel %vm786, %v773, %v526
    %v809 = vsel %vm786, %v774, %v529
    %v810 = vsel %vm786, %v775, %v532
    %v811 = vsel %vm786, %v776, %v535
    %v812 = vsel %vm786, %v777, %v538
    %v813 = vsel %vm786, %v778, %v541
    %v814 = vsel %vm786, %v779, %v544
    %v815 = vsel %vm786, %v780, %v547
    %v816 = vsel %vm786, %v781, %v550
    %v817 = vsel %vm786, %v782, %v553
    %v818 = vsel %vm786, %v783, %v556
    %vm819 = vcmask 1042432
    %v822 = vsel %vm819, %v787, %v717
    %v825 = vsel %vm819, %v788, %v718
    %v828 = vsel %vm819, %v789, %v719
    %v831 = vsel %vm819, %v790, %v720
    %v834 = vsel %vm819, %v791, %v721
    %v837 = vsel %vm819, %v792, %v722
    %v840 = vsel %vm819, %v793, %v723
    %v843 = vsel %vm819, %v794, %v724
    %v846 = vsel %vm819, %v795, %v725
    %v849 = vsel %vm819, %v796, %v726
    %v852 = vsel %vm819, %v797, %v727
    %v855 = vsel %vm819, %v798, %v728
    %v858 = vsel %vm819, %v799, %v729
    %v861 = vsel %vm819, %v800, %v730
    %v864 = vsel %vm819, %v801, %v731
    %v867 = vsel %vm819, %v802, %v732
    %v870 = vsel %vm819, %v803, %v733
    %v873 = vsel %vm819, %v804, %v734
    %v876 = vsel %vm819, %v805, %v735
    %v879 = vsel %vm819, %v806, %v736
    %v882 = vsel %vm819, %v807, %v737
    %v885 = vsel %vm819, %v808, %v738
    %v888 = vsel %vm819, %v809, %v739
    %v891 = vsel %vm819, %v810, %v740
    %v894 = vsel %vm819, %v811, %v741
    %v897 = vsel %vm819, %v812, %v742
    %v900 = vsel %vm819, %v813, %v743
    %v903 = vsel %vm819, %v814, %v744
    %v906 = vsel %vm819, %v815, %v745
    %v909 = vsel %vm819, %v816, %v746
    %v912 = vsel %vm819, %v817, %v747
    %v915 = vsel %vm819, %v818, %v748
    %v948 = vunpack.c.l.b16 %v822
    %v949 = vunpack.c.l.b16 %v825
    %v950 = vunpack.c.l.b16 %v828
    %v951 = vunpack.c.l.b16 %v831
    %v952 = vunpack.c.h.b16 %v822
    %v953 = vunpack.c.h.b16 %v825
    %v954 = vunpack.c.h.b16 %v828
    %v955 = vunpack.c.h.b16 %v831
    %v956 = vunpack.c.l.b16 %v834
    %v957 = vunpack.c.l.b16 %v837
    %v958 = vunpack.c.l.b16 %v840
    %v959 = vunpack.c.l.b16 %v843
    %v960 = vunpack.c.h.b16 %v834
    %v961 = vunpack.c.h.b16 %v837
    %v962 = vunpack.c.h.b16 %v840
    %v963 = vunpack.c.h.b16 %v843
    %v964 = vunpack.c.l.b16 %v846
    %v965 = vunpack.c.l.b16 %v849
    %v966 = vunpack.c.l.b16 %v852
    %v967 = vunpack.c.l.b16 %v855
    %v968 = vunpack.c.h.b16 %v846
    %v969 = vunpack.c.h.b16 %v849
    %v970 = vunpack.c.h.b16 %v852
    %v971 = vunpack.c.h.b16 %v855
    %v972 = vunpack.c.l.b16 %v858
    %v973 = vunpack.c.l.b16 %v861
    %v974 = vunpack.c.l.b16 %v864
    %v975 = vunpack.c.l.b16 %v867
    %v976 = vunpack.c.h.b16 %v858
    %v977 = vunpack.c.h.b16 %v861
    %v978 = vunpack.c.h.b16 %v864
    %v979 = vunpack.c.h.b16 %v867
    %v980 = vunpack.c.l.b16 %v870
    %v981 = vunpack.c.l.b16 %v873
    %v982 = vunpack.c.l.b16 %v876
    %v983 = vunpack.c.l.b16 %v879
    %v984 = vunpack.c.h.b16 %v870
    %v985 = vunpack.c.h.b16 %v873
    %v986 = vunpack.c.h.b16 %v876
    %v987 = vunpack.c.h.b16 %v879
    %v988 = vunpack.c.l.b16 %v882
    %v989 = vunpack.c.l.b16 %v885
    %v990 = vunpack.c.l.b16 %v888
    %v991 = vunpack.c.l.b16 %v891
    %v992 = vunpack.c.h.b16 %v882
    %v993 = vunpack.c.h.b16 %v885
    %v994 = vunpack.c.h.b16 %v888
    %v995 = vunpack.c.h.b16 %v891
    %v996 = vunpack.c.l.b16 %v894
    %v997 = vunpack.c.l.b16 %v897
    %v998 = vunpack.c.l.b16 %v900
    %v999 = vunpack.c.l.b16 %v903
    %v1000 = vunpack.c.h.b16 %v894
    %v1001 = vunpack.c.h.b16 %v897
    %v1002 = vunpack.c.h.b16 %v900
    %v1003 = vunpack.c.h.b16 %v903
    %v1004 = vunpack.c.l.b16 %v906
    %v1005 = vunpack.c.l.b16 %v909
    %v1006 = vunpack.c.l.b16 %v912
    %v1007 = vunpack.c.l.b16 %v915
    %v1008 = vunpack.c.h.b16 %v906
    %v1009 = vunpack.c.h.b16 %v909
    %v1010 = vunpack.c.h.b16 %v912
    %v1011 = vunpack.c.h.b16 %v915
    %v1012 = vpack.c.b16 %v949, %v948
    %v1013 = vpack.c.b16 %v951, %v950
    %v1014 = vpack.c.b16 %v953, %v952
    %v1015 = vpack.c.b16 %v955, %v954
    %v1016 = vpack.c.b16 %v957, %v956
    %v1017 = vpack.c.b16 %v959, %v958
    %v1018 = vpack.c.b16 %v961, %v960
    %v1019 = vpack.c.b16 %v963, %v962
    %v1020 = vpack.c.b16 %v965, %v964
    %v1021 = vpack.c.b16 %v967, %v966
    %v1022 = vpack.c.b16 %v969, %v968
    %v1023 = vpack.c.b16 %v971, %v970
    %v1024 = vpack.c.b16 %v973, %v972
    %v1025 = vpack.c.b16 %v975, %v974
    %v1026 = vpack.c.b16 %v977, %v976
    %v1027 = vpack.c.b16 %v979, %v978
    %v1028 = vpack.c.b16 %v981, %v980
    %v1029 = vpack.c.b16 %v983, %v982
    %v1030 = vpack.c.b16 %v985, %v984
    %v1031 = vpack.c.b16 %v987, %v986
    %v1032 = vpack.c.b16 %v989, %v988
    %v1033 = vpack.c.b16 %v991, %v990
    %v1034 = vpack.c.b16 %v993, %v992
    %v1035 = vpack.c.b16 %v995, %v994
    %v1036 = vpack.c.b16 %v997, %v996
    %v1037 = vpack.c.b16 %v999, %v998
    %v1038 = vpack.c.b16 %v1001, %v1000
    %v1039 = vpack.c.b16 %v1003, %v1002
    %v1040 = vpack.c.b16 %v1005, %v1004
    %v1041 = vpack.c.b16 %v1007, %v1006
    %v1042 = vpack.c.b16 %v1009, %v1008
    %v1043 = vpack.c.b16 %v1011, %v1010
    %1076 = vst [vmem:[#allocation2] sm:$0xff] %v1012
    %1077 = vst [vmem:[#allocation2 + $0x8] sm:$0xff] %v1013
    %1078 = vst [vmem:[#allocation2 + $0x10] sm:$0xff] %v1014
    %1079 = vst [vmem:[#allocation2 + $0x18] sm:$0xff] %v1015
    %1080 = vst [vmem:[#allocation2 + $0x20] sm:$0xff] %v1016
    %1081 = vst [vmem:[#allocation2 + $0x28] sm:$0xff] %v1017
    %1082 = vst [vmem:[#allocation2 + $0x30] sm:$0xff] %v1018
    %1083 = vst [vmem:[#allocation2 + $0x38] sm:$0xff] %v1019
    %1084 = vst [vmem:[#allocation2 + $0x40] sm:$0xff] %v1020
    %1085 = vst [vmem:[#allocation2 + $0x48] sm:$0xff] %v1021
    %1086 = vst [vmem:[#allocation2 + $0x50] sm:$0xff] %v1022
    %1087 = vst [vmem:[#allocation2 + $0x58] sm:$0xff] %v1023
    %1088 = vst [vmem:[#allocation2 + $0x60] sm:$0xff] %v1024
    %1089 = vst [vmem:[#allocation2 + $0x68] sm:$0xff] %v1025
    %1090 = vst [vmem:[#allocation2 + $0x70] sm:$0xff] %v1026
    %1091 = vst [vmem:[#allocation2 + $0x78] sm:$0xff] %v1027
    %1092 = vst [vmem:[#allocation2 + $0x80] sm:$0xff] %v1028
    %1093 = vst [vmem:[#allocation2 + $0x88] sm:$0xff] %v1029
    %1094 = vst [vmem:[#allocation2 + $0x90] sm:$0xff] %v1030
    %1095 = vst [vmem:[#allocation2 + $0x98] sm:$0xff] %v1031
    %1096 = vst [vmem:[#allocation2 + $0xa0] sm:$0xff] %v1032
    %1097 = vst [vmem:[#allocation2 + $0xa8] sm:$0xff] %v1033
    %1098 = vst [vmem:[#allocation2 + $0xb0] sm:$0xff] %v1034
    %1099 = vst [vmem:[#allocation2 + $0xb8] sm:$0xff] %v1035
    %1100 = vst [vmem:[#allocation2 + $0xc0] sm:$0xff] %v1036
    %1101 = vst [vmem:[#allocation2 + $0xc8] sm:$0xff] %v1037
    %1102 = vst [vmem:[#allocation2 + $0xd0] sm:$0xff] %v1038
    %1103 = vst [vmem:[#allocation2 + $0xd8] sm:$0xff] %v1039
    %1104 = vst [vmem:[#allocation2 + $0xe0] sm:$0xff] %v1040
    %1105 = vst [vmem:[#allocation2 + $0xe8] sm:$0xff] %v1041
    %1106 = vst [vmem:[#allocation2 + $0xf0] sm:$0xff] %v1042
    %1107 = vst [vmem:[#allocation2 + $0xf8] sm:$0xff] %v1043
    // Predicated region
    $region18: #{tpu_custom_call.1} parent=1 // pred_check
      _
    $region19: #{tpu_custom_call.1} parent=1 // pred_check_branch
      %1109 = sbr.rel (0) target = $region21
    $region20: #{tpu_custom_call.1} parent=1 // pred_region
      %1111 = vsyncadd [#allocation3], 0
      %s1112 = sshll.u32 [#allocation2], 4
      %s1113 = int_to_ptr.vmem [resolvable:$true] %s1112
      %s1114 = sshll.u32 %s4, 4
      %s1115 = int_to_ptr.hbm [resolvable:$true] %s1114
      %1120 = dma.vmem_to_hbm [thread:$0]  %s1113, 4096, %s1115, [#allocation3], 256, 256, 16
    $region21: #{tpu_custom_call.1} parent=1 // pred_fallthru
      _
    // Predicated region
    $region22: #{tpu_custom_call.1} parent=1 // pred_check
      _
    $region23: #{tpu_custom_call.1} parent=1 // pred_check_branch
      %1122 = sbr.rel (0) target = $region25
    $region24: #{tpu_custom_call.1} parent=1 // pred_region
      %1124 = dma.done [#allocation3], 4096
    $region25: #{tpu_custom_call.1} parent=1 // pred_fallthru
      _
    %1125 = vsyncpa [#allocation3], 1

</llo_original>
